<compile_context>
chip_gen: v5e
topology: v5e:2x2
jax: 0.10.0
libtpu: 0.0.40
codegen_flags: <defaults>
</compile_context>

<pallas_src>
import functools

import jax
import jax.numpy as jnp
from jax.experimental import pallas as pl
from jax.experimental.pallas import tpu as pltpu


def _context_atten_kernel(mt_ref, hc_ref, wm_ref, w1t_ref, v_ref,
                          alpha_ref, ct_ref):
    mt = mt_ref[...]        # (CW, H)
    hc = hc_ref[...]        # (1,  H)
    wm = wm_ref[...]        # (H,  H)
    w1t = w1t_ref[...]      # (H,  H)   == W1^T
    v_row = v_ref[...]      # (1,  H)   == V^T (lane-dense)

    # proj = hc @ W1^T  -> (1, H); broadcast-added across the CW rows (free VALU).
    proj = jnp.dot(hc, w1t, preferred_element_type=jnp.float32)

    # s = tanh(Mt @ Wm + proj)  -> (CW, H)
    s = jnp.tanh(jnp.dot(mt, wm, preferred_element_type=jnp.float32) + proj)

    # At (lane-dense row): (1, CW) = v_row (1,H) · s (CW,H), contracting on H.
    at_row = jax.lax.dot_general(
        v_row, s, (((1,), (1,)), ((), ())),
        preferred_element_type=jnp.float32)                       # (1, CW)

    # log_softmax along the lane (CW) axis.
    m = jnp.max(at_row, axis=-1, keepdims=True)                   # (1, 1)
    lse = jnp.log(jnp.sum(jnp.exp(at_row - m), axis=-1, keepdims=True)) + m
    alpha_row = at_row - lse                                       # (1, CW)
    alpha_ref[...] = alpha_row

    # ct = alphat @ Mt  (LOG-probabilities as weights, exactly as in the torch
    # module) — skinny matmul on the already-warm MXU.
    ct_ref[...] = jnp.dot(alpha_row, mt, preferred_element_type=jnp.float32)


@functools.partial(jax.jit, static_argnames=("context_window",))
def context_atten_forward(inputs, hc, Wm, W1T, V_row, *, context_window):
    """inputs: (seq, 1, H) f32; hc: anything with H elements; W1T/V_row prepped once."""
    hidden_dim = Wm.shape[0]

    # Only per-call glue left: slicing the context window (part of the forward
    # semantics) and viewing hc as a row.
    Mt = inputs[-context_window - 1:-1].reshape(context_window, hidden_dim)
    hc_row = hc.reshape(1, hidden_dim)

    flops = (2 * context_window * hidden_dim * hidden_dim      # Mt @ Wm
             + 2 * hidden_dim * hidden_dim                     # hc @ W1^T
             + 2 * context_window * hidden_dim                 # v · s
             + 2 * context_window * hidden_dim)                # alpha @ Mt
    transcendentals = context_window * hidden_dim + context_window   # tanh + exp
    bytes_accessed = 4 * (context_window * hidden_dim           # Mt
                          + hidden_dim                          # hc
                          + 2 * hidden_dim * hidden_dim         # Wm, W1^T
                          + hidden_dim                          # V^T
                          + context_window + hidden_dim)        # outputs
    cost = pl.CostEstimate(flops=flops,
                           transcendentals=transcendentals,
                           bytes_accessed=bytes_accessed)

    grid_spec = pltpu.PrefetchScalarGridSpec(
        num_scalar_prefetch=0,
        grid=(1,),
        in_specs=[
            pl.BlockSpec((context_window, hidden_dim), lambda i: (0, 0)),  # Mt
            pl.BlockSpec((1, hidden_dim), lambda i: (0, 0)),               # hc
            pl.BlockSpec((hidden_dim, hidden_dim), lambda i: (0, 0)),      # Wm
            pl.BlockSpec((hidden_dim, hidden_dim), lambda i: (0, 0)),      # W1^T
            pl.BlockSpec((1, hidden_dim), lambda i: (0, 0)),               # V^T
        ],
        out_specs=[
            pl.BlockSpec((1, context_window), lambda i: (0, 0)),           # alphat
            pl.BlockSpec((1, hidden_dim), lambda i: (0, 0)),               # ct
        ],
    )

    alphat, ct = pl.pallas_call(
        _context_atten_kernel,
        grid_spec=grid_spec,
        out_shape=(
            jax.ShapeDtypeStruct((1, context_window), jnp.float32),
            jax.ShapeDtypeStruct((1, hidden_dim), jnp.float32),
        ),
        compiler_params=pltpu.CompilerParams(
            dimension_semantics=("arbitrary",)),
        cost_estimate=cost,
    )(Mt, hc_row, Wm, W1T, V_row)

    return alphat, ct


def prepare_params(Wm, W1, V):
    """Static weight prep, done once at init (hoisted out of the forward)."""
    hidden_dim = Wm.shape[0]
    W1T = jnp.asarray(W1).T                     # (H, H)  for hc @ W1^T
    V_row = jnp.asarray(V).reshape(1, hidden_dim)  # (1, H) lane-dense V^T
    return jnp.asarray(Wm), W1T, V_row


def _reference(inputs, hc, Wm, W1, V, context_window):
    hidden_dim = Wm.shape[0]
    Mt = inputs[-context_window - 1:-1].reshape(context_window, hidden_dim)
    proj = hc.reshape(1, hidden_dim) @ W1.T
    At = jnp.tanh(Mt @ Wm + jnp.ones((context_window, 1)) @ proj) @ V
    alphat = jax.nn.log_softmax(At.reshape(1, -1), axis=1)
    ct = alphat @ Mt
    return alphat, ct


if __name__ == "__main__":
    hidden_dim = 32
    context_window = 8
    seq_len = 16

    key = jax.random.PRNGKey(0)
    k_in, k_hc, k_w1 = jax.random.split(key, 3)

    inputs = jax.random.normal(k_in, (seq_len, 1, hidden_dim), dtype=jnp.float32)
    hc = jax.random.normal(k_hc, (1, hidden_dim), dtype=jnp.float32)

    # Deterministic parameter init matching the module's __init__ shapes:
    Wm = jnp.ones((hidden_dim, hidden_dim), dtype=jnp.float32)   # nn.Parameter(torch.ones(H, H))
    V = jnp.ones((hidden_dim, 1), dtype=jnp.float32)             # nn.Parameter(torch.ones(H, 1))
    bound = 1.0 / (hidden_dim ** 0.5)
    W1 = jax.random.uniform(k_w1, (hidden_dim, hidden_dim),
                            minval=-bound, maxval=bound, dtype=jnp.float32)  # linear1.weight (out, in)

    # One-time (init) weight prep — not re-run per forward call.
    Wm_p, W1T_p, V_row_p = prepare_params(Wm, W1, V)

    alphat, ct = context_atten_forward(inputs, hc, Wm_p, W1T_p, V_row_p,
                                       context_window=context_window)
    jax.block_until_ready((alphat, ct))

    # Sanity check against the pure-JAX reference.
    alphat_ref, ct_ref = _reference(inputs, hc, Wm, W1, V, context_window)
    assert alphat.shape == (1, context_window) and ct.shape == (1, hidden_dim)
    assert jnp.allclose(alphat, alphat_ref, atol=1e-4, rtol=1e-4)
    assert jnp.allclose(ct, ct_ref, atol=1e-4, rtol=1e-4)

    print("KERNEL_OK")
</pallas_src>

<mosaic_0001>
module attributes {stable_mosaic.version = 11 : i64} {
  func.func @_context_atten_kernel(%arg0: i32, %arg1: memref<8x32xf32, #tpu.memory_space<vmem>>, %arg2: memref<1x32xf32, #tpu.memory_space<vmem>>, %arg3: memref<32x32xf32, #tpu.memory_space<vmem>>, %arg4: memref<32x32xf32, #tpu.memory_space<vmem>>, %arg5: memref<1x32xf32, #tpu.memory_space<vmem>>, %arg6: memref<1x8xf32, #tpu.memory_space<vmem>>, %arg7: memref<1x32xf32, #tpu.memory_space<vmem>>) attributes {dimension_semantics = [#tpu.dimension_semantics<arbitrary>], iteration_bounds = array<i64: 1>, scalar_prefetch = 0 : i64, scratch_operands = 0 : i64, tpu.core_type = #tpu.core_type<tc>, window_params = [{pipeline_mode = #tpu.pipeline_mode<synchronous>, transform_indices = @transform_0, window_bounds = array<i64: 8, 32>}, {pipeline_mode = #tpu.pipeline_mode<synchronous>, transform_indices = @transform_1, window_bounds = array<i64: 1, 32>}, {pipeline_mode = #tpu.pipeline_mode<synchronous>, transform_indices = @transform_2, window_bounds = array<i64: 32, 32>}, {pipeline_mode = #tpu.pipeline_mode<synchronous>, transform_indices = @transform_3, window_bounds = array<i64: 32, 32>}, {pipeline_mode = #tpu.pipeline_mode<synchronous>, transform_indices = @transform_4, window_bounds = array<i64: 1, 32>}, {pipeline_mode = #tpu.pipeline_mode<synchronous>, transform_indices = @transform_5, window_bounds = array<i64: 1, 8>}, {pipeline_mode = #tpu.pipeline_mode<synchronous>, transform_indices = @transform_6, window_bounds = array<i64: 1, 32>}]} {
    %c0 = arith.constant 0 : index
    %c0_0 = arith.constant 0 : index
    %0 = vector.load %arg1[%c0, %c0_0] : memref<8x32xf32, #tpu.memory_space<vmem>>, vector<8x32xf32>
    %c0_1 = arith.constant 0 : index
    %c0_2 = arith.constant 0 : index
    %1 = vector.load %arg2[%c0_1, %c0_2] : memref<1x32xf32, #tpu.memory_space<vmem>>, vector<1x32xf32>
    %c0_3 = arith.constant 0 : index
    %c0_4 = arith.constant 0 : index
    %2 = vector.load %arg3[%c0_3, %c0_4] : memref<32x32xf32, #tpu.memory_space<vmem>>, vector<32x32xf32>
    %c0_5 = arith.constant 0 : index
    %c0_6 = arith.constant 0 : index
    %3 = vector.load %arg4[%c0_5, %c0_6] : memref<32x32xf32, #tpu.memory_space<vmem>>, vector<32x32xf32>
    %c0_7 = arith.constant 0 : index
    %c0_8 = arith.constant 0 : index
    %4 = vector.load %arg5[%c0_7, %c0_8] : memref<1x32xf32, #tpu.memory_space<vmem>>, vector<1x32xf32>
    %cst = arith.constant dense<0.000000e+00> : vector<1x32xf32>
    %5 = tpu.matmul %1, %3, %cst {dimension_numbers = #tpu.dot_dimension_numbers<[1], [0], [0], [1], [0, 0, 1, 1], [], []>} : vector<1x32xf32>, vector<32x32xf32>, vector<1x32xf32> -> vector<1x32xf32>
    %cst_9 = arith.constant dense<0.000000e+00> : vector<8x32xf32>
    %6 = tpu.matmul %0, %2, %cst_9 {dimension_numbers = #tpu.dot_dimension_numbers<[1], [0], [0], [1], [0, 0, 1, 1], [], []>} : vector<8x32xf32>, vector<32x32xf32>, vector<8x32xf32> -> vector<8x32xf32>
    %7 = vector.broadcast %5 : vector<1x32xf32> to vector<8x32xf32>
    %8 = arith.addf %6, %7 : vector<8x32xf32>
    %9 = math.tanh %8 : vector<8x32xf32>
    %cst_10 = arith.constant dense<0.000000e+00> : vector<1x8xf32>
    %10 = tpu.matmul %4, %9, %cst_10 {dimension_numbers = #tpu.dot_dimension_numbers<[1], [1], [0], [0], [0, 0, 1, 0], [], []>} : vector<1x32xf32>, vector<8x32xf32>, vector<1x8xf32> -> vector<1x8xf32>
    %cst_11 = arith.constant dense<0xFF800000> : vector<1xf32>
    %11 = vector.multi_reduction <maximumf>, %10, %cst_11 [1] : vector<1x8xf32> to vector<1xf32>
    %12 = vector.shape_cast %11 : vector<1xf32> to vector<1x1xf32>
    %13 = vector.broadcast %12 : vector<1x1xf32> to vector<1x8xf32>
    %14 = arith.subf %10, %13 : vector<1x8xf32>
    %15 = math.exp %14 : vector<1x8xf32>
    %cst_12 = arith.constant dense<0.000000e+00> : vector<1xf32>
    %16 = vector.multi_reduction <add>, %15, %cst_12 [1] : vector<1x8xf32> to vector<1xf32>
    %17 = vector.shape_cast %16 : vector<1xf32> to vector<1x1xf32>
    %18 = math.log %17 : vector<1x1xf32>
    %19 = arith.addf %18, %12 : vector<1x1xf32>
    %20 = vector.broadcast %19 : vector<1x1xf32> to vector<1x8xf32>
    %21 = arith.subf %10, %20 : vector<1x8xf32>
    %c0_13 = arith.constant 0 : index
    %c0_14 = arith.constant 0 : index
    %22 = vector.load %arg6[%c0_13, %c0_14] : memref<1x8xf32, #tpu.memory_space<vmem>>, vector<1x8xf32>
    tpu.vector_store %arg6[%c0_13, %c0_14], %21 {strides = array<i32>} : memref<1x8xf32, #tpu.memory_space<vmem>>, vector<1x8xf32>,
    %cst_15 = arith.constant dense<0.000000e+00> : vector<1x32xf32>
    %23 = tpu.matmul %21, %0, %cst_15 {dimension_numbers = #tpu.dot_dimension_numbers<[1], [0], [0], [1], [0, 0, 1, 1], [], []>} : vector<1x8xf32>, vector<8x32xf32>, vector<1x32xf32> -> vector<1x32xf32>
    %c0_16 = arith.constant 0 : index
    %c0_17 = arith.constant 0 : index
    %24 = vector.load %arg7[%c0_16, %c0_17] : memref<1x32xf32, #tpu.memory_space<vmem>>, vector<1x32xf32>
    tpu.vector_store %arg7[%c0_16, %c0_17], %23 {strides = array<i32>} : memref<1x32xf32, #tpu.memory_space<vmem>>, vector<1x32xf32>,
    return
  }
  func.func @transform_0(%arg0: i32) -> (i32, i32) {
    %c0_i32 = arith.constant 0 : i32
    %c0_i32_0 = arith.constant 0 : i32
    %c0_i32_1 = arith.constant 0 : i32
    return %c0_i32, %c0_i32_0 : i32, i32
  }
  func.func @transform_1(%arg0: i32) -> (i32, i32) {
    %c0_i32 = arith.constant 0 : i32
    %c0_i32_0 = arith.constant 0 : i32
    %c0_i32_1 = arith.constant 0 : i32
    return %c0_i32, %c0_i32_0 : i32, i32
  }
  func.func @transform_2(%arg0: i32) -> (i32, i32) {
    %c0_i32 = arith.constant 0 : i32
    %c0_i32_0 = arith.constant 0 : i32
    %c0_i32_1 = arith.constant 0 : i32
    return %c0_i32, %c0_i32_0 : i32, i32
  }
  func.func @transform_3(%arg0: i32) -> (i32, i32) {
    %c0_i32 = arith.constant 0 : i32
    %c0_i32_0 = arith.constant 0 : i32
    %c0_i32_1 = arith.constant 0 : i32
    return %c0_i32, %c0_i32_0 : i32, i32
  }
  func.func @transform_4(%arg0: i32) -> (i32, i32) {
    %c0_i32 = arith.constant 0 : i32
    %c0_i32_0 = arith.constant 0 : i32
    %c0_i32_1 = arith.constant 0 : i32
    return %c0_i32, %c0_i32_0 : i32, i32
  }
  func.func @transform_5(%arg0: i32) -> (i32, i32) {
    %c0_i32 = arith.constant 0 : i32
    %c0_i32_0 = arith.constant 0 : i32
    %c0_i32_1 = arith.constant 0 : i32
    return %c0_i32, %c0_i32_0 : i32, i32
  }
  func.func @transform_6(%arg0: i32) -> (i32, i32) {
    %c0_i32 = arith.constant 0 : i32
    %c0_i32_0 = arith.constant 0 : i32
    %c0_i32_1 = arith.constant 0 : i32
    return %c0_i32, %c0_i32_0 : i32, i32
  }
}

</mosaic_0001>

<llo_original>
// kernel: context_atten_forward.1
$region0: #{context_atten_forward.1}
  #allocation0 [shape = 'u32[]', space=smem, size = 0x4, offset = 0x4, fixed_abs, tag = 'smem constant byte address 0x4 - core index']
  #allocation1 [shape = 'u32[72,128]{1,0:T(1,128)}', space=vmem, size = 0x9000, scoped, tag = 'internal scratch']
  %s0 = inlined_call_operand.vmem [shape: f32[8,32], index: 0, kind: input, shape index: {}]
  %s1 = inlined_call_operand.vmem [shape: f32[1,32], index: 1, kind: input, shape index: {}]
  %s2 = inlined_call_operand.hbm [shape: f32[32,32], index: 2, kind: input, shape index: {}]
  %s3 = inlined_call_operand.hbm [shape: f32[32,32], index: 3, kind: input, shape index: {}]
  %s4 = inlined_call_operand.vmem [shape: f32[1,32], index: 4, kind: input, shape index: {}]
  %s5 = inlined_call_operand.hbm [shape: f32[1,8], index: 5, kind: output, shape index: {0}]
  %s6 = inlined_call_operand.hbm [shape: f32[1,32], index: 6, kind: output, shape index: {1}]
  %7 = xla_tuple %s5, %s6
  %s8 = sld [smem:[#allocation0]]
  $region46: #{context_atten_forward.1} parent=0
    _
  %s10 = ssub.s32 1, %s8
  %s11 = scalar_select 0, %s10, %s8
  $region1: #{context_atten_forward.1} parent=0
    #allocation2 [shape = 'u8[16384]{0}', space=vmem, size = 0x4000, scoped, tag = 'input window, operand 2, single buffered']
    #allocation3 [shape = 's32[1]{0}', space=sflag, size = 0x4, scoped, tag = 'scoped memory for context_atten_forward.1']
    #allocation4 [shape = 's32[1]{0}', space=sflag, size = 0x4, scoped, tag = 'scoped memory for context_atten_forward.1']
    #allocation5 [shape = 'u8[16384]{0}', space=vmem, size = 0x4000, scoped, tag = 'input window, operand 3, single buffered']
    #allocation6 [shape = 's32[1]{0}', space=sflag, size = 0x4, scoped, tag = 'scoped memory for context_atten_forward.1']
    #allocation7 [shape = 'u8[512]{0}', space=vmem, size = 0x400, scoped, tag = 'output window, operand 0, single buffered']
    #allocation8 [shape = 'u8[512]{0}', space=vmem, size = 0x400, scoped, tag = 'output window, operand 1, single buffered']
    #allocation9 [shape = 's32[1]{0}', space=sflag, size = 0x4, scoped, tag = 'scoped memory for context_atten_forward.1']
    %12 = vsyncpa [#allocation3], 0
    %13 = vsyncpa [#allocation6], 0
    %14 = vsyncpa [#allocation4], 0
    %15 = vsyncpa [#allocation9], 0
    // Predicated region
    $region2: #{context_atten_forward.1} parent=1 // pred_check
      _
    $region3: #{context_atten_forward.1} parent=1 // pred_check_branch
      %17 = sbr.rel (0) target = $region5
    $region4: #{context_atten_forward.1} parent=1 // pred_region
      _
    $region5: #{context_atten_forward.1} parent=1 // pred_fallthru
      _
    // Predicated region
    $region6: #{context_atten_forward.1} parent=1 // pred_check
      _
    $region7: #{context_atten_forward.1} parent=1 // pred_check_branch
      %19 = sbr.rel (0) target = $region9
    $region8: #{context_atten_forward.1} parent=1 // pred_region
      _
    $region9: #{context_atten_forward.1} parent=1 // pred_fallthru
      _
    // Predicated region
    $region10: #{context_atten_forward.1} parent=1 // pred_check
      _
    $region11: #{context_atten_forward.1} parent=1 // pred_check_branch
      %21 = sbr.rel (0) target = $region13
    $region12: #{context_atten_forward.1} parent=1 // pred_region
      %23 = vsyncadd [#allocation3], 0
      %s24 = sshll.u32 %s2, 4
      %s25 = int_to_ptr.hbm [resolvable:$true] %s24
      %s26 = sshll.u32 [#allocation2], 4
      %s27 = int_to_ptr.vmem [resolvable:$true] %s26
      %32 = dma.hbm_to_vmem [thread:$0]  %s25, 512, %s27, [#allocation3], 128, 128, 8
    $region13: #{context_atten_forward.1} parent=1 // pred_fallthru
      _
    // Predicated region
    $region14: #{context_atten_forward.1} parent=1 // pred_check
      _
    $region15: #{context_atten_forward.1} parent=1 // pred_check_branch
      %34 = sbr.rel (0) target = $region17
    $region16: #{context_atten_forward.1} parent=1 // pred_region
      %36 = vsyncadd [#allocation6], 0
      %s37 = sshll.u32 %s3, 4
      %s38 = int_to_ptr.hbm [resolvable:$true] %s37
      %s39 = sshll.u32 [#allocation5], 4
      %s40 = int_to_ptr.vmem [resolvable:$true] %s39
      %45 = dma.hbm_to_vmem [thread:$0]  %s38, 512, %s40, [#allocation6], 128, 128, 8
    $region17: #{context_atten_forward.1} parent=1 // pred_fallthru
      _
    // Predicated region
    $region18: #{context_atten_forward.1} parent=1 // pred_check
      _
    $region19: #{context_atten_forward.1} parent=1 // pred_check_branch
      %47 = sbr.rel (0) target = $region21
    $region20: #{context_atten_forward.1} parent=1 // pred_region
      _
    $region21: #{context_atten_forward.1} parent=1 // pred_fallthru
      _
    // Predicated region
    $region22: #{context_atten_forward.1} parent=1 // pred_check
      _
    $region23: #{context_atten_forward.1} parent=1 // pred_check_branch
      %49 = sbr.rel (0) target = $region25
    $region24: #{context_atten_forward.1} parent=1 // pred_region
      %51 = dma.done [#allocation3], 512
    $region25: #{context_atten_forward.1} parent=1 // pred_fallthru
      _
    // Predicated region
    $region26: #{context_atten_forward.1} parent=1 // pred_check
      _
    $region27: #{context_atten_forward.1} parent=1 // pred_check_branch
      %53 = sbr.rel (0) target = $region29
    $region28: #{context_atten_forward.1} parent=1 // pred_region
      %55 = dma.done [#allocation6], 512
    $region29: #{context_atten_forward.1} parent=1 // pred_fallthru
      _
    %v56 = vld [vmem:[%s0] sm:$0xff]
    %v57 = vld [vmem:[%s1] sm:$0x1]
    %v58 = vld [vmem:[#allocation2] sm:$0xff]
    %v59 = vld [vmem:[#allocation2 + $0x8] sm:$0xff]
    %v60 = vld [vmem:[#allocation2 + $0x10] sm:$0xff]
    %v61 = vld [vmem:[#allocation2 + $0x18] sm:$0xff]
    %v62 = vld [vmem:[#allocation5] sm:$0xff]
    %v63 = vld [vmem:[#allocation5 + $0x8] sm:$0xff]
    %v64 = vld [vmem:[#allocation5 + $0x10] sm:$0xff]
    %v65 = vld [vmem:[#allocation5 + $0x18] sm:$0xff]
    %v66 = vld [vmem:[%s4] sm:$0x1]
    %vm67 = vcmask 261120
    %v69 = vsel %vm67, %v57, 0
    %71 = vmatpush.msra.mxu0 0.0
    %72 = vmatpush.msra.mxu0 0.0
    %73 = vmatpush.msra.mxu0 0.0
    %74 = vmatpush.msra.mxu0 0.0
    %75 = vmatpush.msra.mxu0 0.0
    %76 = vmatpush.msra.mxu0 0.0
    %77 = vmatpush.msra.mxu0 0.0
    %78 = vmatpush.msra.mxu0 0.0
    %79 = vmatpush.msra.mxu0 0.0
    %80 = vmatpush.msra.mxu0 0.0
    %81 = vmatpush.msra.mxu0 0.0
    %82 = vmatpush.msra.mxu0 0.0
    %83 = vmatpush.msra.mxu0 %v65
    %84 = vmatpush.msra.mxu0 %v64
    %85 = vmatpush.msra.mxu0 %v63
    %86 = vmatpush.msra.mxu0 %v62
    %87 = vmatmul.f32.gmra.mxu0 %v69
    %v88 = vpop.f32.mrf.mxu0
    %v89 = vadd.f32 0.0, %v88
    %90 = vdwg.mxu0
    %v91 = vperm.slane %v89, 0
    %v93 = vsel %vm67, %v56, 0
    %95 = vmatpush.msra.mxu0 0.0
    %96 = vmatpush.msra.mxu0 0.0
    %97 = vmatpush.msra.mxu0 0.0
    %98 = vmatpush.msra.mxu0 0.0
    %99 = vmatpush.msra.mxu0 0.0
    %100 = vmatpush.msra.mxu0 0.0
    %101 = vmatpush.msra.mxu0 0.0
    %102 = vmatpush.msra.mxu0 0.0
    %103 = vmatpush.msra.mxu0 0.0
    %104 = vmatpush.msra.mxu0 0.0
    %105 = vmatpush.msra.mxu0 0.0
    %106 = vmatpush.msra.mxu0 0.0
    %107 = vmatpush.msra.mxu0 %v61
    %108 = vmatpush.msra.mxu0 %v60
    %109 = vmatpush.msra.mxu0 %v59
    %110 = vmatpush.msra.mxu0 %v58
    %111 = vmatmul.f32.gmra.mxu0 %v93
    %v112 = vpop.f32.mrf.mxu0
    %v113 = vadd.f32 %v91, %v112
    %114 = vdwg.mxu0
    %v115 = vtanh.pop %v113
    %v117 = vsel %vm67, %v66, 0
    %v120 = vsel %vm67, %v115, 0
    %122 = vmatpush.xpose.msra.mxu0 0.0
    %123 = vmatpush.xpose.msra.mxu0 0.0
    %124 = vmatpush.xpose.msra.mxu0 0.0
    %125 = vmatpush.xpose.msra.mxu0 0.0
    %126 = vmatpush.xpose.msra.mxu0 0.0
    %127 = vmatpush.xpose.msra.mxu0 0.0
    %128 = vmatpush.xpose.msra.mxu0 0.0
    %129 = vmatpush.xpose.msra.mxu0 0.0
    %130 = vmatpush.xpose.msra.mxu0 0.0
    %131 = vmatpush.xpose.msra.mxu0 0.0
    %132 = vmatpush.xpose.msra.mxu0 0.0
    %133 = vmatpush.xpose.msra.mxu0 0.0
    %134 = vmatpush.xpose.msra.mxu0 0.0
    %135 = vmatpush.xpose.msra.mxu0 0.0
    %136 = vmatpush.xpose.msra.mxu0 0.0
    %137 = vmatpush.xpose.msra.mxu0 %v120
    %138 = vmatmul.f32.gmra.mxu0 %v117
    %v139 = vpop.f32.mrf.mxu0
    %v140 = vadd.f32 0.0, %v139
    %141 = vdwg.mxu0
    %vm142 = vcmask 57344
    %v143 = vsel %vm142, %v140, -inf
    %144 = vmax.xlane.f32.xlu0 %v143
    %v145 = vpop.xlane.xlu0 %144
    %v146 = vsub.f32 %v140, %v145
    %v147 = vmul.f32 %v146, 1.442695
    %v148 = vpow.pop %v147
    %v149 = vsel %vm142, %v148, 0.0
    %150 = vadd.xlane.f32.xlu0 %v149
    %v151 = vpop.xlane.xlu0 %150
    %v152 = vlog2.pop %v151
    %v153 = vmul.f32 %v152, 0.6931472
    %v154 = vadd.f32 %v153, %v145
    %v155 = vsub.f32 %v140, %v154
    %156 = vst.msk [vmem:[#allocation7] sm:$0x1] %vm142, %v155
    %vm157 = vcmask 64512
    %v159 = vsel %vm157, %v155, 0
    %161 = vmatpush.msra.mxu0 0.0
    %162 = vmatpush.msra.mxu0 0.0
    %163 = vmatpush.msra.mxu0 0.0
    %164 = vmatpush.msra.mxu0 0.0
    %165 = vmatpush.msra.mxu0 0.0
    %166 = vmatpush.msra.mxu0 0.0
    %167 = vmatpush.msra.mxu0 0.0
    %168 = vmatpush.msra.mxu0 0.0
    %169 = vmatpush.msra.mxu0 0.0
    %170 = vmatpush.msra.mxu0 0.0
    %171 = vmatpush.msra.mxu0 0.0
    %172 = vmatpush.msra.mxu0 0.0
    %173 = vmatpush.msra.mxu0 0.0
    %174 = vmatpush.msra.mxu0 0.0
    %175 = vmatpush.msra.mxu0 0.0
    %176 = vmatpush.msra.mxu0 %v56
    %177 = vmatmul.f32.gmra.mxu0 %v159
    %v178 = vpop.f32.mrf.mxu0
    %v179 = vadd.f32 0.0, %v178
    %180 = vdwg.mxu0
    %vm181 = vcmask 253952
    %182 = vst.msk [vmem:[#allocation8] sm:$0x1] %vm181, %v179
    // Predicated region
    $region30: #{context_atten_forward.1} parent=1 // pred_check
      _
    $region31: #{context_atten_forward.1} parent=1 // pred_check_branch
      %184 = sbr.rel (0) target = $region33
    $region32: #{context_atten_forward.1} parent=1 // pred_region
      %186 = vsyncadd [#allocation4], 0
      %s188 = sshll.u32 [#allocation7], 4
      %s189 = int_to_ptr.vmem [resolvable:$true] %s188
      %s190 = sshll.u32 %s5, 4
      %s191 = int_to_ptr.hbm [resolvable:$true] %s190
      %193 = dma.vmem_to_hbm [thread:$0]  %s189, 16, %s191, [#allocation4]
    $region33: #{context_atten_forward.1} parent=1 // pred_fallthru
      _
    // Predicated region
    $region34: #{context_atten_forward.1} parent=1 // pred_check
      _
    $region35: #{context_atten_forward.1} parent=1 // pred_check_branch
      %195 = sbr.rel (0) target = $region37
    $region36: #{context_atten_forward.1} parent=1 // pred_region
      %197 = vsyncadd [#allocation9], 0
      %s199 = sshll.u32 [#allocation8], 4
      %s200 = int_to_ptr.vmem [resolvable:$true] %s199
      %s201 = sshll.u32 %s6, 4
      %s202 = int_to_ptr.hbm [resolvable:$true] %s201
      %204 = dma.vmem_to_hbm [thread:$0]  %s200, 16, %s202, [#allocation9]
    $region37: #{context_atten_forward.1} parent=1 // pred_fallthru
      _
    // Predicated region
    $region38: #{context_atten_forward.1} parent=1 // pred_check
      _
    $region39: #{context_atten_forward.1} parent=1 // pred_check_branch
      %206 = sbr.rel (0) target = $region41
    $region40: #{context_atten_forward.1} parent=1 // pred_region
      %208 = dma.done [#allocation4], 16
    $region41: #{context_atten_forward.1} parent=1 // pred_fallthru
      _
    // Predicated region
    $region42: #{context_atten_forward.1} parent=1 // pred_check
      _
    $region43: #{context_atten_forward.1} parent=1 // pred_check_branch
      %210 = sbr.rel (0) target = $region45
    $region44: #{context_atten_forward.1} parent=1 // pred_region
      %212 = dma.done [#allocation9], 16
    $region45: #{context_atten_forward.1} parent=1 // pred_fallthru
      _
    %213 = vsyncpa [#allocation3], 1
    %214 = vsyncpa [#allocation6], 1
    %215 = vsyncpa [#allocation4], 1
    %216 = vsyncpa [#allocation9], 1

</llo_original>
